<compile_context>
chip_gen: v7x
topology: tpu7x:2x2x1
jax: 0.10.0
libtpu: 0.0.40
codegen_flags: <defaults>
</compile_context>

<pallas_src>
import functools

import jax
import jax.numpy as jnp
from jax.experimental import pallas as pl
from jax.experimental.pallas import tpu as pltpu

_FEATURES = 32                 # input features of the Linear chain
_PACK = 128 // _FEATURES       # 4 batch samples packed per 128-lane vreg row


def fused_mlp_kernel(x_ref, w4_ref, b_ref, o_ref):
    # x_ref : (tbr, 128) -- lanes [32g, 32g+32) of row r hold sample 4r+g
    # w4_ref: (4, 128)   -- row g = fused weight vector in group-g lanes, zeros elsewhere
    # b_ref : (1, 1)     -- fused bias
    # o_ref : (tbr, 4)   -- column g = output of sample 4r+g
    x = x_ref[...]
    b = b_ref[...]                                    # (1, 1), broadcasts over rows
    for g in range(_PACK):                            # static, unrolled at trace time
        # VPU broadcast-mul + XLU 128-lane reduce; zeros outside group g contribute 0.
        yg = jnp.sum(x * w4_ref[g:g + 1, :], axis=-1, keepdims=True) + b   # (tbr, 1) f32
        o_ref[:, g:g + 1] = yg.astype(o_ref.dtype)


def _choose_row_tile(rows, max_rows):
    """Packed-row tile: large (amortize ~0.35 us/grid-step), multiple of 8 sublanes,
    and >= 2 grid steps when there's enough work so v7x's two TensorCores both engage."""
    if rows <= max_rows:
        if rows >= 16 and rows % 8 == 0:
            return max(8, ((rows // 2) // 8) * 8)     # split evenly across >= 2 steps
        return rows                                   # tiny / ragged: single full-array block
    return max(8, (max_rows // 8) * 8)


@functools.partial(jax.jit, static_argnames=("block_b",))
def mlp_forward(x, w1, b1, w2, b2, w3, b3, *, block_b=8192):
    B, F = x.shape
    assert F == _FEATURES, "kernel packing assumes 32 input features"

    # Exact algebraic fusion of the linear chain (no nonlinearities between layers).
    # Under jit these tiny matmuls fuse/constant-fold into the same XLA computation;
    # if weights are static across calls they can be precomputed once outside.
    w_fused = w1 @ w2 @ w3                            # (32, 1)
    b_fused = b1 @ w2 @ w3 + b2 @ w3 + b3             # (1, 1)
    # Row g carries w_fused in lanes [32g, 32g+32), zeros elsewhere.
    w4 = jnp.kron(jnp.eye(_PACK, dtype=w_fused.dtype), jnp.transpose(w_fused))  # (4, 128)

    # Pack 4 samples per 128-lane row (zero-copy, row-major contiguous).
    pad = (-B) % _PACK
    if pad:
        x = jnp.concatenate([x, jnp.zeros((pad, F), x.dtype)], axis=0)
    rows = (B + pad) // _PACK
    x_packed = x.reshape(rows, _PACK * F)             # (B/4, 128)

    tbr = _choose_row_tile(rows, max(1, block_b // _PACK))
    grid = (pl.cdiv(rows, tbr),)

    out_packed = pl.pallas_call(
        fused_mlp_kernel,
        out_shape=jax.ShapeDtypeStruct((rows, _PACK), x.dtype),
        grid=grid,
        in_specs=[
            pl.BlockSpec((tbr, _PACK * F), lambda i: (i, 0)),    # x: tiled over packed rows
            pl.BlockSpec((_PACK, _PACK * F), lambda i: (0, 0)),  # fused weights: VMEM-resident
            pl.BlockSpec((1, 1), lambda i: (0, 0)),              # fused bias: VMEM-resident
        ],
        out_specs=pl.BlockSpec((tbr, _PACK), lambda i: (i, 0)),
        compiler_params=pltpu.CompilerParams(dimension_semantics=("parallel",)),
    )(x_packed, w4, b_fused)

    # Zero-copy unpack: row-major flatten of (B/4, 4) is exactly batch order.
    return out_packed.reshape(rows * _PACK, 1)[:B]


def init_linear_params(key, in_features, out_features):
    # Deterministic init mirroring nn.Linear's default uniform(-1/sqrt(in), 1/sqrt(in)).
    kw, kb = jax.random.split(key)
    bound = 1.0 / jnp.sqrt(jnp.float32(in_features))
    w = jax.random.uniform(kw, (in_features, out_features), jnp.float32, -bound, bound)
    b = jax.random.uniform(kb, (1, out_features), jnp.float32, -bound, bound)
    return w, b


if __name__ == "__main__":
    key = jax.random.PRNGKey(0)
    kx, k1, k2, k3 = jax.random.split(key, 4)

    B = 8
    x = jax.random.normal(kx, (B, 32), jnp.float32)

    w1, b1 = init_linear_params(k1, 32, 16)
    w2, b2 = init_linear_params(k2, 16, 8)
    w3, b3 = init_linear_params(k3, 8, 1)

    out = mlp_forward(x, w1, b1, w2, b2, w3, b3)
    jax.block_until_ready(out)

    # Pure-JAX reference: the original (un-fused) 3-layer chain.
    ref = ((x @ w1 + b1) @ w2 + b2) @ w3 + b3
    assert out.shape == (B, 1)
    assert jnp.allclose(out, ref, atol=1e-5, rtol=1e-5)

    print("KERNEL_OK")
</pallas_src>

<mosaic_0001>
module attributes {stable_mosaic.version = 11 : i64} {
  func.func @fused_mlp_kernel(%arg0: i32, %arg1: memref<2x128xf32, #tpu.memory_space<vmem>>, %arg2: memref<4x128xf32, #tpu.memory_space<vmem>>, %arg3: memref<1x1xf32, #tpu.memory_space<vmem>>, %arg4: memref<2x4xf32, #tpu.memory_space<vmem>>) attributes {dimension_semantics = [#tpu.dimension_semantics<parallel>], iteration_bounds = array<i64: 1>, scalar_prefetch = 0 : i64, scratch_operands = 0 : i64, tpu.core_type = #tpu.core_type<tc>, window_params = [{transform_indices = @transform_0, window_bounds = array<i64: 2, 128>}, {pipeline_mode = #tpu.pipeline_mode<synchronous>, transform_indices = @transform_1, window_bounds = array<i64: 4, 128>}, {pipeline_mode = #tpu.pipeline_mode<synchronous>, transform_indices = @transform_2, window_bounds = array<i64: 1, 1>}, {transform_indices = @transform_3, window_bounds = array<i64: 2, 4>}]} {
    %c0 = arith.constant 0 : index
    %c0_0 = arith.constant 0 : index
    %0 = vector.load %arg1[%c0, %c0_0] : memref<2x128xf32, #tpu.memory_space<vmem>>, vector<2x128xf32>
    %c0_1 = arith.constant 0 : index
    %c0_2 = arith.constant 0 : index
    %1 = vector.load %arg3[%c0_1, %c0_2] : memref<1x1xf32, #tpu.memory_space<vmem>>, vector<1x1xf32>
    %c0_3 = arith.constant 0 : index
    %c0_4 = arith.constant 0 : index
    %2 = vector.load %arg2[%c0_3, %c0_4] : memref<4x128xf32, #tpu.memory_space<vmem>>, vector<1x128xf32>
    %3 = vector.broadcast %2 : vector<1x128xf32> to vector<2x128xf32>
    %4 = arith.mulf %0, %3 : vector<2x128xf32>
    %cst = arith.constant dense<0.000000e+00> : vector<2xf32>
    %5 = vector.multi_reduction <add>, %4, %cst [1] : vector<2x128xf32> to vector<2xf32>
    %6 = vector.shape_cast %5 : vector<2xf32> to vector<2x1xf32>
    %7 = vector.broadcast %1 : vector<1x1xf32> to vector<2x1xf32>
    %8 = arith.addf %6, %7 : vector<2x1xf32>
    %c0_5 = arith.constant 0 : index
    %c0_6 = arith.constant 0 : index
    %9 = vector.load %arg4[%c0_5, %c0_6] : memref<2x4xf32, #tpu.memory_space<vmem>>, vector<2x1xf32>
    tpu.vector_store %arg4[%c0_5, %c0_6], %8 {strides = array<i32>} : memref<2x4xf32, #tpu.memory_space<vmem>>, vector<2x1xf32>,
    %c1 = arith.constant 1 : index
    %c0_7 = arith.constant 0 : index
    %10 = vector.load %arg2[%c1, %c0_7] : memref<4x128xf32, #tpu.memory_space<vmem>>, vector<1x128xf32>
    %11 = vector.broadcast %10 : vector<1x128xf32> to vector<2x128xf32>
    %12 = arith.mulf %0, %11 : vector<2x128xf32>
    %cst_8 = arith.constant dense<0.000000e+00> : vector<2xf32>
    %13 = vector.multi_reduction <add>, %12, %cst_8 [1] : vector<2x128xf32> to vector<2xf32>
    %14 = vector.shape_cast %13 : vector<2xf32> to vector<2x1xf32>
    %15 = vector.broadcast %1 : vector<1x1xf32> to vector<2x1xf32>
    %16 = arith.addf %14, %15 : vector<2x1xf32>
    %c0_9 = arith.constant 0 : index
    %c1_10 = arith.constant 1 : index
    %17 = vector.load %arg4[%c0_9, %c1_10] : memref<2x4xf32, #tpu.memory_space<vmem>>, vector<2x1xf32>
    tpu.vector_store %arg4[%c0_9, %c1_10], %16 {strides = array<i32>} : memref<2x4xf32, #tpu.memory_space<vmem>>, vector<2x1xf32>,
    %c2 = arith.constant 2 : index
    %c0_11 = arith.constant 0 : index
    %18 = vector.load %arg2[%c2, %c0_11] : memref<4x128xf32, #tpu.memory_space<vmem>>, vector<1x128xf32>
    %19 = vector.broadcast %18 : vector<1x128xf32> to vector<2x128xf32>
    %20 = arith.mulf %0, %19 : vector<2x128xf32>
    %cst_12 = arith.constant dense<0.000000e+00> : vector<2xf32>
    %21 = vector.multi_reduction <add>, %20, %cst_12 [1] : vector<2x128xf32> to vector<2xf32>
    %22 = vector.shape_cast %21 : vector<2xf32> to vector<2x1xf32>
    %23 = vector.broadcast %1 : vector<1x1xf32> to vector<2x1xf32>
    %24 = arith.addf %22, %23 : vector<2x1xf32>
    %c0_13 = arith.constant 0 : index
    %c2_14 = arith.constant 2 : index
    %25 = vector.load %arg4[%c0_13, %c2_14] : memref<2x4xf32, #tpu.memory_space<vmem>>, vector<2x1xf32>
    tpu.vector_store %arg4[%c0_13, %c2_14], %24 {strides = array<i32>} : memref<2x4xf32, #tpu.memory_space<vmem>>, vector<2x1xf32>,
    %c3 = arith.constant 3 : index
    %c0_15 = arith.constant 0 : index
    %26 = vector.load %arg2[%c3, %c0_15] : memref<4x128xf32, #tpu.memory_space<vmem>>, vector<1x128xf32>
    %27 = vector.broadcast %26 : vector<1x128xf32> to vector<2x128xf32>
    %28 = arith.mulf %0, %27 : vector<2x128xf32>
    %cst_16 = arith.constant dense<0.000000e+00> : vector<2xf32>
    %29 = vector.multi_reduction <add>, %28, %cst_16 [1] : vector<2x128xf32> to vector<2xf32>
    %30 = vector.shape_cast %29 : vector<2xf32> to vector<2x1xf32>
    %31 = vector.broadcast %1 : vector<1x1xf32> to vector<2x1xf32>
    %32 = arith.addf %30, %31 : vector<2x1xf32>
    %c0_17 = arith.constant 0 : index
    %c3_18 = arith.constant 3 : index
    %33 = vector.load %arg4[%c0_17, %c3_18] : memref<2x4xf32, #tpu.memory_space<vmem>>, vector<2x1xf32>
    tpu.vector_store %arg4[%c0_17, %c3_18], %32 {strides = array<i32>} : memref<2x4xf32, #tpu.memory_space<vmem>>, vector<2x1xf32>,
    return
  }
  func.func @transform_0(%arg0: i32) -> (i32, i32) {
    %c0_i32 = arith.constant 0 : i32
    %c0_i32_0 = arith.constant 0 : i32
    return %arg0, %c0_i32 : i32, i32
  }
  func.func @transform_1(%arg0: i32) -> (i32, i32) {
    %c0_i32 = arith.constant 0 : i32
    %c0_i32_0 = arith.constant 0 : i32
    %c0_i32_1 = arith.constant 0 : i32
    return %c0_i32, %c0_i32_0 : i32, i32
  }
  func.func @transform_2(%arg0: i32) -> (i32, i32) {
    %c0_i32 = arith.constant 0 : i32
    %c0_i32_0 = arith.constant 0 : i32
    %c0_i32_1 = arith.constant 0 : i32
    return %c0_i32, %c0_i32_0 : i32, i32
  }
  func.func @transform_3(%arg0: i32) -> (i32, i32) {
    %c0_i32 = arith.constant 0 : i32
    %c0_i32_0 = arith.constant 0 : i32
    return %arg0, %c0_i32 : i32, i32
  }
}

</mosaic_0001>

<llo_original>
// kernel: mlp_forward.1
$region0: #{mlp_forward.1}
  #allocation0 [shape = 'u32[]', space=smem, size = 0x4, offset = 0x4, fixed_abs, tag = 'smem constant byte address 0x4 - core index']
  #allocation1 [shape = 'u32[144,128]{1,0:T(1,128)}', space=vmem, size = 0x12000, scoped, tag = 'internal scratch']
  #allocation2 [shape = 'f32[1,1]{1,0:T(1,128)S(1)}', space=vmem, size = 0x200, scoped, tag = 'scoped memory for mlp_forward.1']
  %s0 = inlined_call_operand.vmem [shape: f32[2,128], index: 0, kind: input, shape index: {}]
  %s1 = inlined_call_operand.vmem [shape: f32[4,128], index: 1, kind: input, shape index: {}]
  %s2 = inlined_call_operand.<no memory space> [shape: f32[1,1], index: 2, kind: input, shape index: {}]
  %s3 = inlined_call_operand.vmem [shape: f32[2,4], index: 3, kind: output, shape index: {}]
  %s4 = sld [smem:[#allocation0]]
  $region22: #{mlp_forward.1} parent=0
    _
  %s6 = ssub.s32 1, %s4
  %s7 = scalar_select 0, %s6, %s4
  %v8 = vstv %s2
  %9 = vst [vmem:[#allocation2] sm:$0x1] %v8
  // Predicated region
  $region2: #{mlp_forward.1} parent=0 // pred_check
    _
  $region3: #{mlp_forward.1} parent=0 // pred_check_branch
    %11 = sbr.rel (0) target = $region5
  $region4: #{mlp_forward.1} parent=0 // pred_region
    _
  $region5: #{mlp_forward.1} parent=0 // pred_fallthru
    _
  // Predicated region
  $region6: #{mlp_forward.1} parent=0 // pred_check
    _
  $region7: #{mlp_forward.1} parent=0 // pred_check_branch
    %13 = sbr.rel (0) target = $region9
  $region8: #{mlp_forward.1} parent=0 // pred_region
    _
  $region9: #{mlp_forward.1} parent=0 // pred_fallthru
    _
  // Predicated region
  $region10: #{mlp_forward.1} parent=0 // pred_check
    _
  $region11: #{mlp_forward.1} parent=0 // pred_check_branch
    %15 = sbr.rel (0) target = $region13
  $region12: #{mlp_forward.1} parent=0 // pred_region
    _
  $region13: #{mlp_forward.1} parent=0 // pred_fallthru
    _
  %v16 = vld [vmem:[%s0] sm:$0x3]
  %v17 = vld [vmem:[#allocation2] sm:$0x1]
  %v18 = vld [vmem:[%s1] sm:$0x1]
  %v19 = vlaneseq
  %v20 = vshrl.u32 %v19, 7
  %v21 = vsub.s32 0, %v20
  %v22 = vrot.slane %v18, %v21
  %v23 = vmul.f32 %v16, %v22
  %vm24 = vcmask 1041408
  %v25 = vsel %vm24, %v23, 0.0
  %26 = vadd.xlane.f32.xlu0 %v25
  %v27 = vpop.xlane.xlu0 %26
  %v29 = vlaneseq
  %v30 = vshrl.u32 %v29, 7
  %v31 = vsub.s32 0, %v30
  %v32 = vrot.slane %v17, %v31
  %v34 = vadd.f32 %v27, %v32
  %vm35 = vcmask 1024
  %36 = vst.msk [vmem:[%s3] sm:$0x3] %vm35, %v34
  %v37 = vld [vmem:[%s1 + $0x1] sm:$0x1]
  %v38 = vlaneseq
  %v39 = vshrl.u32 %v38, 7
  %v40 = vsub.s32 0, %v39
  %v41 = vrot.slane %v37, %v40
  %v42 = vmul.f32 %v16, %v41
  %v43 = vsel %vm24, %v42, 0.0
  %44 = vadd.xlane.f32.xlu0 %v43
  %v45 = vpop.xlane.xlu0 %44
  %v46 = vadd.f32 %v45, %v32
  %48 = vrot.lane.b32.xlu0 %v46, 1
  %v49 = vpop.permute.xlu0 %48
  %vm51 = vcmask 9224
  %52 = vst.msk [vmem:[%s3] sm:$0x3] %vm51, %v49
  %v53 = vld [vmem:[%s1 + $0x2] sm:$0x1]
  %v54 = vlaneseq
  %v55 = vshrl.u32 %v54, 7
  %v56 = vsub.s32 0, %v55
  %v57 = vrot.slane %v53, %v56
  %v58 = vmul.f32 %v16, %v57
  %v59 = vsel %vm24, %v58, 0.0
  %60 = vadd.xlane.f32.xlu0 %v59
  %v61 = vpop.xlane.xlu0 %60
  %v62 = vadd.f32 %v61, %v32
  %64 = vrot.lane.b32.xlu0 %v62, 2
  %v65 = vpop.permute.xlu0 %64
  %vm67 = vcmask 17424
  %68 = vst.msk [vmem:[%s3] sm:$0x3] %vm67, %v65
  %v69 = vld [vmem:[%s1 + $0x3] sm:$0x1]
  %v70 = vlaneseq
  %v71 = vshrl.u32 %v70, 7
  %v72 = vsub.s32 0, %v71
  %v73 = vrot.slane %v69, %v72
  %v74 = vmul.f32 %v16, %v73
  %v75 = vsel %vm24, %v74, 0.0
  %76 = vadd.xlane.f32.xlu0 %v75
  %v77 = vpop.xlane.xlu0 %76
  %v78 = vadd.f32 %v77, %v32
  %80 = vrot.lane.b32.xlu0 %v78, 3
  %v81 = vpop.permute.xlu0 %80
  %vm83 = vcmask 25624
  %84 = vst.msk [vmem:[%s3] sm:$0x3] %vm83, %v81
  // Predicated region
  $region14: #{mlp_forward.1} parent=0 // pred_check
    _
  $region15: #{mlp_forward.1} parent=0 // pred_check_branch
    %86 = sbr.rel (0) target = $region17
  $region16: #{mlp_forward.1} parent=0 // pred_region
    _
  $region17: #{mlp_forward.1} parent=0 // pred_fallthru
    _
  // Predicated region
  $region18: #{mlp_forward.1} parent=0 // pred_check
    _
  $region19: #{mlp_forward.1} parent=0 // pred_check_branch
    %88 = sbr.rel (0) target = $region21
  $region20: #{mlp_forward.1} parent=0 // pred_region
    _
  $region21: #{mlp_forward.1} parent=0 // pred_fallthru
    _

</llo_original>
